<compile_context>
chip_gen: v7x
topology: tpu7x:2x2x1
jax: 0.10.0
libtpu: 0.0.40
codegen_flags: <defaults>
</compile_context>

<pallas_src>
import jax
import jax.numpy as jnp
from jax.experimental import pallas as pl
from jax.experimental.pallas import tpu as pltpu

EPS = 1e-6


def _sublayer_connection_kernel(x_ref, gamma_ref, beta_ref, w_ref, b_ref, o_ref):
    x = x_ref[...].astype(jnp.float32)                 # (tm, H), f32 math
    H = x.shape[-1]

    # --- LayerNorm: centered two-pass stats (unbiased std, eps added to std) ---
    mean = jnp.sum(x, axis=-1, keepdims=True) / H
    xc = x - mean
    var = jnp.sum(xc * xc, axis=-1, keepdims=True) / (H - 1)   # torch .std() ddof=1
    std = jnp.sqrt(var)
    inv = pl.reciprocal(std + EPS)                     # exact; one EUP op per row
    normed = xc * (gamma_ref[...] * inv) + beta_ref[...]

    # --- sublayer: Linear(H, H) — bf16 operands on the MXU, f32 accumulation ---
    y = jnp.dot(normed.astype(jnp.bfloat16), w_ref[...],
                preferred_element_type=jnp.float32)
    y = y + b_ref[...]

    # --- dropout (eval mode = identity) + residual, cast on store ---
    # TODO(synk): training-mode stochastic dropout (pltpu.prng_random_bits mask)
    o_ref[...] = (x + y).astype(o_ref.dtype)


def _round_up(a, b):
    return (a + b - 1) // b * b


def _vmem_limit_bytes():
    # Generation-aware cap: ~80% of physical VMEM (v5e/v6e 128 MiB -> ~102 MiB,
    # v7x 64 MiB -> ~51 MiB). Leaves headroom for compiler-internal scratch.
    try:
        cap = int(pltpu.get_tpu_info().vmem_capacity_bytes)
    except Exception:
        cap = 64 << 20                                  # conservative fallback
    return max(32 << 20, int(cap * 0.8))


def _choose_tile_rows(M, H, itemsize, vmem_bytes):
    # Sublane-packed row multiple for the input/output dtype.
    row_mult = {1: 32, 2: 16}.get(itemsize, 8)
    # Target >= ~2 MiB of HBM traffic (x in + out) per grid step so the ~0.35us
    # fixed per-step pipeline overhead is amortized (matters even more on v7x).
    target = max(row_mult, (2 << 20) // max(1, 2 * H * itemsize))
    # x + out, double-buffered, must fit in ~half the VMEM budget (rest goes to
    # the resident bf16 weight, small params, and compiler scratch).
    cap = max(row_mult, (vmem_bytes // 2) // max(1, 4 * H * itemsize))
    tr = _round_up(min(target, cap, 4096), row_mult)
    tr = min(tr, _round_up(M, row_mult))                # never bigger than the data
    # Keep >= 2 grid steps when there is enough data: preserves double-buffering
    # and lets both v7x TensorCores get work.
    if pl.cdiv(M, tr) < 2 and M > 2 * row_mult:
        tr = _round_up(pl.cdiv(M, 2), row_mult)
    return tr


def prepare_params(gamma, beta, w, b):
    """One-time parameter prep (do NOT redo per forward call).

    gamma/beta: [H] LayerNorm a_2/b_2; w: [H, H]; b: [H] Linear bias.
    Weight is pre-cast to bf16 for the MXU (halves its VMEM footprint);
    1-D params reshaped to lane-dense (1, H) rows.
    """
    H = w.shape[0]
    return (gamma.reshape(1, H).astype(jnp.float32),
            beta.reshape(1, H).astype(jnp.float32),
            w.astype(jnp.bfloat16),
            b.reshape(1, H).astype(jnp.float32))


def sublayer_connection(x, params):
    """x: [B, S, H]; params = prepare_params(gamma, beta, w, b)."""
    gamma2, beta2, w_bf16, b2 = params
    B, S, H = x.shape
    assert H >= 2, "unbiased std (ddof=1) needs at least 2 features"
    M = B * S
    itemsize = jnp.dtype(x.dtype).itemsize

    vmem_limit = _vmem_limit_bytes()
    tile_rows = _choose_tile_rows(M, H, itemsize, vmem_limit)
    # No pad / no slice: Mosaic masks writes past M in the overhanging last
    # block, and the garbage rows it reads never feed any cross-row reduction.
    grid = (pl.cdiv(M, tile_rows),)

    x2 = x.reshape(M, H)                                # metadata-only reshape

    cost = pl.CostEstimate(
        flops=2 * M * H * H + 10 * M * H,
        transcendentals=2 * M,                          # sqrt + reciprocal per row
        bytes_accessed=2 * M * H * itemsize + H * H * 2 + 3 * H * 4,
    )

    def row_map(i):
        return (i, 0)

    def const_map(i):
        return (0, 0)

    def const_spec(shape):
        # Grid-invariant operand: fetched once, single-buffered (no wasted copy).
        return pl.BlockSpec(shape, const_map, pipeline_mode=pl.Buffered(1))

    out = pl.pallas_call(
        _sublayer_connection_kernel,
        out_shape=jax.ShapeDtypeStruct((M, H), x.dtype),
        grid_spec=pltpu.PrefetchScalarGridSpec(
            num_scalar_prefetch=0,
            grid=grid,
            in_specs=[
                pl.BlockSpec((tile_rows, H), row_map),   # x rows (pipelined)
                const_spec((1, H)),                      # gamma (a_2)
                const_spec((1, H)),                      # beta (b_2)
                const_spec((H, H)),                      # W, bf16, resident
                const_spec((1, H)),                      # linear bias
            ],
            out_specs=pl.BlockSpec((tile_rows, H), row_map),
        ),
        compiler_params=pltpu.CompilerParams(
            dimension_semantics=("parallel",),           # rows shard across TCs
            vmem_limit_bytes=vmem_limit,
        ),
        cost_estimate=cost,
    )(x2, gamma2, beta2, w_bf16, b2)

    return out.reshape(B, S, H)


def _reference(x, gamma, beta, w, b):
    """Pure-JAX reference (same bf16 GEMM path so tolerances stay tight)."""
    xf = x.astype(jnp.float32)
    H = xf.shape[-1]
    mean = jnp.mean(xf, axis=-1, keepdims=True)
    xc = xf - mean
    var = jnp.sum(xc * xc, axis=-1, keepdims=True) / (H - 1)
    std = jnp.sqrt(var)
    normed = gamma * xc / (std + EPS) + beta
    y = jnp.dot(normed.astype(jnp.bfloat16), w.astype(jnp.bfloat16),
                preferred_element_type=jnp.float32) + b
    return (xf + y).astype(x.dtype)


if __name__ == "__main__":
    B, S, H = 2, 8, 128                                  # lane-dense hidden size
    key = jax.random.PRNGKey(0)
    kx, kw, kb = jax.random.split(key, 3)

    x = jax.random.normal(kx, (B, S, H), dtype=jnp.float32)

    # LayerNorm params exactly as in __init__: ones / zeros.
    gamma = jnp.ones((H,), dtype=jnp.float32)
    beta = jnp.zeros((H,), dtype=jnp.float32)

    # Deterministic synthetic sublayer (Linear(H, H)) parameters.
    w = jax.random.normal(kw, (H, H), dtype=jnp.float32) / jnp.sqrt(H)
    b = 0.1 * jax.random.normal(kb, (H,), dtype=jnp.float32)

    params = prepare_params(gamma, beta, w, b)           # one-time, off the hot path
    out = sublayer_connection(x, params)
    out = jax.block_until_ready(out)

    ref = _reference(x, gamma, beta, w, b)
    assert out.shape == (B, S, H)
    # Residual tolerance covers bf16 GEMM operand rounding + MXU vs XLA
    # accumulation order (reciprocal is now exact).
    assert jnp.allclose(out, ref, atol=1e-2, rtol=1e-2), "mismatch vs reference"

    print("KERNEL_OK")
</pallas_src>

<mosaic_0001>
module attributes {stable_mosaic.version = 11 : i64} {
  func.func @_sublayer_connection_kernel(%arg0: i32, %arg1: memref<16x128xf32, #tpu.memory_space<vmem>>, %arg2: memref<1x128xf32, #tpu.memory_space<vmem>>, %arg3: memref<1x128xf32, #tpu.memory_space<vmem>>, %arg4: memref<128x128xbf16, #tpu.memory_space<vmem>>, %arg5: memref<1x128xf32, #tpu.memory_space<vmem>>, %arg6: memref<16x128xf32, #tpu.memory_space<vmem>>) attributes {dimension_semantics = [#tpu.dimension_semantics<parallel>], iteration_bounds = array<i64: 1>, scalar_prefetch = 0 : i64, scratch_operands = 0 : i64, tpu.core_type = #tpu.core_type<tc>, window_params = [{transform_indices = @transform_0, window_bounds = array<i64: 16, 128>}, {pipeline_mode = #tpu.pipeline_mode<synchronous>, transform_indices = @transform_1, window_bounds = array<i64: 1, 128>}, {pipeline_mode = #tpu.pipeline_mode<synchronous>, transform_indices = @transform_2, window_bounds = array<i64: 1, 128>}, {pipeline_mode = #tpu.pipeline_mode<synchronous>, transform_indices = @transform_3, window_bounds = array<i64: 128, 128>}, {pipeline_mode = #tpu.pipeline_mode<synchronous>, transform_indices = @transform_4, window_bounds = array<i64: 1, 128>}, {transform_indices = @transform_5, window_bounds = array<i64: 16, 128>}]} {
    %c0 = arith.constant 0 : index
    %c0_0 = arith.constant 0 : index
    %0 = vector.load %arg1[%c0, %c0_0] : memref<16x128xf32, #tpu.memory_space<vmem>>, vector<16x128xf32>
    %cst = arith.constant dense<0.000000e+00> : vector<16xf32>
    %1 = vector.multi_reduction <add>, %0, %cst [1] : vector<16x128xf32> to vector<16xf32>
    %2 = vector.shape_cast %1 : vector<16xf32> to vector<16x1xf32>
    %cst_1 = arith.constant 1.280000e+02 : f32
    %3 = vector.broadcast %cst_1 : f32 to vector<16x1xf32>
    %4 = arith.divf %2, %3 : vector<16x1xf32>
    %5 = vector.broadcast %4 : vector<16x1xf32> to vector<16x128xf32>
    %6 = arith.subf %0, %5 : vector<16x128xf32>
    %7 = arith.mulf %6, %6 : vector<16x128xf32>
    %cst_2 = arith.constant dense<0.000000e+00> : vector<16xf32>
    %8 = vector.multi_reduction <add>, %7, %cst_2 [1] : vector<16x128xf32> to vector<16xf32>
    %9 = vector.shape_cast %8 : vector<16xf32> to vector<16x1xf32>
    %cst_3 = arith.constant 1.270000e+02 : f32
    %10 = vector.broadcast %cst_3 : f32 to vector<16x1xf32>
    %11 = arith.divf %9, %10 : vector<16x1xf32>
    %12 = math.sqrt %11 : vector<16x1xf32>
    %cst_4 = arith.constant 9.99999997E-7 : f32
    %13 = vector.broadcast %cst_4 : f32 to vector<16x1xf32>
    %14 = arith.addf %12, %13 : vector<16x1xf32>
    %15 = tpu.reciprocal %14 : vector<16x1xf32> -> vector<16x1xf32>
    %c0_5 = arith.constant 0 : index
    %c0_6 = arith.constant 0 : index
    %16 = vector.load %arg2[%c0_5, %c0_6] : memref<1x128xf32, #tpu.memory_space<vmem>>, vector<1x128xf32>
    %17 = vector.broadcast %16 : vector<1x128xf32> to vector<16x128xf32>
    %18 = vector.broadcast %15 : vector<16x1xf32> to vector<16x128xf32>
    %19 = arith.mulf %17, %18 : vector<16x128xf32>
    %20 = arith.mulf %6, %19 : vector<16x128xf32>
    %c0_7 = arith.constant 0 : index
    %c0_8 = arith.constant 0 : index
    %21 = vector.load %arg3[%c0_7, %c0_8] : memref<1x128xf32, #tpu.memory_space<vmem>>, vector<1x128xf32>
    %22 = vector.broadcast %21 : vector<1x128xf32> to vector<16x128xf32>
    %23 = arith.addf %20, %22 : vector<16x128xf32>
    %24 = arith.truncf %23 : vector<16x128xf32> to vector<16x128xbf16>
    %c0_9 = arith.constant 0 : index
    %c0_10 = arith.constant 0 : index
    %25 = vector.load %arg4[%c0_9, %c0_10] : memref<128x128xbf16, #tpu.memory_space<vmem>>, vector<128x128xbf16>
    %cst_11 = arith.constant dense<0.000000e+00> : vector<16x128xf32>
    %26 = tpu.matmul %24, %25, %cst_11 {dimension_numbers = #tpu.dot_dimension_numbers<[1], [0], [0], [1], [0, 0, 1, 1], [], []>} : vector<16x128xbf16>, vector<128x128xbf16>, vector<16x128xf32> -> vector<16x128xf32>
    %c0_12 = arith.constant 0 : index
    %c0_13 = arith.constant 0 : index
    %27 = vector.load %arg5[%c0_12, %c0_13] : memref<1x128xf32, #tpu.memory_space<vmem>>, vector<1x128xf32>
    %28 = vector.broadcast %27 : vector<1x128xf32> to vector<16x128xf32>
    %29 = arith.addf %26, %28 : vector<16x128xf32>
    %30 = arith.addf %0, %29 : vector<16x128xf32>
    %c0_14 = arith.constant 0 : index
    %c0_15 = arith.constant 0 : index
    %31 = vector.load %arg6[%c0_14, %c0_15] : memref<16x128xf32, #tpu.memory_space<vmem>>, vector<16x128xf32>
    tpu.vector_store %arg6[%c0_14, %c0_15], %30 {strides = array<i32>} : memref<16x128xf32, #tpu.memory_space<vmem>>, vector<16x128xf32>,
    return
  }
  func.func @transform_0(%arg0: i32) -> (i32, i32) {
    %c0_i32 = arith.constant 0 : i32
    %c0_i32_0 = arith.constant 0 : i32
    return %arg0, %c0_i32 : i32, i32
  }
  func.func @transform_1(%arg0: i32) -> (i32, i32) {
    %c0_i32 = arith.constant 0 : i32
    %c0_i32_0 = arith.constant 0 : i32
    %c0_i32_1 = arith.constant 0 : i32
    return %c0_i32, %c0_i32_0 : i32, i32
  }
  func.func @transform_2(%arg0: i32) -> (i32, i32) {
    %c0_i32 = arith.constant 0 : i32
    %c0_i32_0 = arith.constant 0 : i32
    %c0_i32_1 = arith.constant 0 : i32
    return %c0_i32, %c0_i32_0 : i32, i32
  }
  func.func @transform_3(%arg0: i32) -> (i32, i32) {
    %c0_i32 = arith.constant 0 : i32
    %c0_i32_0 = arith.constant 0 : i32
    %c0_i32_1 = arith.constant 0 : i32
    return %c0_i32, %c0_i32_0 : i32, i32
  }
  func.func @transform_4(%arg0: i32) -> (i32, i32) {
    %c0_i32 = arith.constant 0 : i32
    %c0_i32_0 = arith.constant 0 : i32
    %c0_i32_1 = arith.constant 0 : i32
    return %c0_i32, %c0_i32_0 : i32, i32
  }
  func.func @transform_5(%arg0: i32) -> (i32, i32) {
    %c0_i32 = arith.constant 0 : i32
    %c0_i32_0 = arith.constant 0 : i32
    return %arg0, %c0_i32 : i32, i32
  }
}

</mosaic_0001>

<llo_original>
// kernel: tpu_custom_call.1
$region0: #{tpu_custom_call.1}
  #allocation0 [shape = 'u32[]', space=smem, size = 0x4, offset = 0x4, fixed_abs, tag = 'smem constant byte address 0x4 - core index']
  #allocation1 [shape = 'u32[144,128]{1,0:T(1,128)}', space=vmem, size = 0x12000, scoped, tag = 'internal scratch']
  %s0 = inlined_call_operand.hbm [shape: f32[16,128], index: 0, kind: input, shape index: {}]
  %s1 = inlined_call_operand.vmem [shape: f32[1,128], index: 1, kind: input, shape index: {}]
  %s2 = inlined_call_operand.vmem [shape: f32[1,128], index: 2, kind: input, shape index: {}]
  %s3 = inlined_call_operand.hbm [shape: bf16[128,128], index: 3, kind: input, shape index: {}]
  %s4 = inlined_call_operand.vmem [shape: f32[1,128], index: 4, kind: input, shape index: {}]
  %s5 = inlined_call_operand.hbm [shape: f32[16,128], index: 5, kind: output, shape index: {}]
  %s6 = sld [smem:[#allocation0]]
  $region38: #{tpu_custom_call.1} parent=0
    _
  %s8 = ssub.s32 1, %s6
  %s9 = scalar_select 0, %s8, %s6
  $region1: #{tpu_custom_call.1} parent=0
    #allocation2 [shape = 'u8[8192]{0}', space=vmem, size = 0x2000, scoped, tag = 'input window, operand 0, single buffered']
    #allocation3 [shape = 's32[1]{0}', space=sflag, size = 0x4, scoped, tag = 'scoped memory for tpu_custom_call.1']
    #allocation4 [shape = 's32[1]{0}', space=sflag, size = 0x4, scoped, tag = 'scoped memory for tpu_custom_call.1']
    #allocation5 [shape = 'u8[32768]{0}', space=vmem, size = 0x8000, scoped, tag = 'input window, operand 3, single buffered']
    #allocation6 [shape = 's32[1]{0}', space=sflag, size = 0x4, scoped, tag = 'scoped memory for tpu_custom_call.1']
    #allocation7 [shape = 'u8[8192]{0}', space=vmem, size = 0x2000, scoped, tag = 'output window, operand 0, single buffered']
    %10 = vsyncpa [#allocation3], 0
    %11 = vsyncpa [#allocation6], 0
    %12 = vsyncpa [#allocation4], 0
    // Predicated region
    $region2: #{tpu_custom_call.1} parent=1 // pred_check
      _
    $region3: #{tpu_custom_call.1} parent=1 // pred_check_branch
      %14 = sbr.rel (0) target = $region5
    $region4: #{tpu_custom_call.1} parent=1 // pred_region
      %s16 = ssub.s32 256, 256
      %17 = vsyncadd [#allocation3], %s16
      %s18 = sshll.u32 [#allocation2], 4
      %s19 = int_to_ptr.vmem [resolvable:$true] %s18
      %24 = dma.hbm_to_vmem [thread:$0]  %s0, 256, %s19, [#allocation3], 128, 128, 8
    $region5: #{tpu_custom_call.1} parent=1 // pred_fallthru
      _
    // Predicated region
    $region6: #{tpu_custom_call.1} parent=1 // pred_check
      _
    $region7: #{tpu_custom_call.1} parent=1 // pred_check_branch
      %26 = sbr.rel (0) target = $region9
    $region8: #{tpu_custom_call.1} parent=1 // pred_region
      _
    $region9: #{tpu_custom_call.1} parent=1 // pred_fallthru
      _
    // Predicated region
    $region10: #{tpu_custom_call.1} parent=1 // pred_check
      _
    $region11: #{tpu_custom_call.1} parent=1 // pred_check_branch
      %28 = sbr.rel (0) target = $region13
    $region12: #{tpu_custom_call.1} parent=1 // pred_region
      _
    $region13: #{tpu_custom_call.1} parent=1 // pred_fallthru
      _
    // Predicated region
    $region14: #{tpu_custom_call.1} parent=1 // pred_check
      _
    $region15: #{tpu_custom_call.1} parent=1 // pred_check_branch
      %30 = sbr.rel (0) target = $region17
    $region16: #{tpu_custom_call.1} parent=1 // pred_region
      %s32 = ssub.s32 1024, 1024
      %33 = vsyncadd [#allocation6], %s32
      %s34 = sshll.u32 [#allocation5], 4
      %s35 = int_to_ptr.vmem [resolvable:$true] %s34
      %40 = dma.hbm_to_vmem [thread:$0]  %s3, 1024, %s35, [#allocation6], 64, 64, 4
    $region17: #{tpu_custom_call.1} parent=1 // pred_fallthru
      _
    // Predicated region
    $region18: #{tpu_custom_call.1} parent=1 // pred_check
      _
    $region19: #{tpu_custom_call.1} parent=1 // pred_check_branch
      %42 = sbr.rel (0) target = $region21
    $region20: #{tpu_custom_call.1} parent=1 // pred_region
      _
    $region21: #{tpu_custom_call.1} parent=1 // pred_fallthru
      _
    // Predicated region
    $region22: #{tpu_custom_call.1} parent=1 // pred_check
      _
    $region23: #{tpu_custom_call.1} parent=1 // pred_check_branch
      %44 = sbr.rel (0) target = $region25
    $region24: #{tpu_custom_call.1} parent=1 // pred_region
      %45 = dma.done [#allocation3], 256
    $region25: #{tpu_custom_call.1} parent=1 // pred_fallthru
      _
    // Predicated region
    $region26: #{tpu_custom_call.1} parent=1 // pred_check
      _
    $region27: #{tpu_custom_call.1} parent=1 // pred_check_branch
      %47 = sbr.rel (0) target = $region29
    $region28: #{tpu_custom_call.1} parent=1 // pred_region
      %48 = dma.done [#allocation6], 1024
    $region29: #{tpu_custom_call.1} parent=1 // pred_fallthru
      _
    %v50 = vld [vmem:[#allocation2] sm:$0xff]
    %v51 = vld [vmem:[#allocation2 + $0x8] sm:$0xff]
    %52 = vadd.xlane.f32.xlu0 %v50
    %v53 = vpop.xlane.xlu0 %52
    %54 = vadd.xlane.f32.xlu0 %v51
    %v55 = vpop.xlane.xlu0 %54
    %v56 = vrcp.pop 128.0
    %v57 = vmul.f32 %v53, %v56
    %v58 = vmul.f32 %v55, %v56
    %v59 = vsub.f32 %v50, %v57
    %v60 = vsub.f32 %v51, %v58
    %v61 = vmul.f32 %v59, %v59
    %v62 = vmul.f32 %v60, %v60
    %63 = vadd.xlane.f32.xlu0 %v61
    %v64 = vpop.xlane.xlu0 %63
    %65 = vadd.xlane.f32.xlu0 %v62
    %v66 = vpop.xlane.xlu0 %65
    %v67 = vrcp.pop 127.0
    %v68 = vmul.f32 %v64, %v67
    %v69 = vmul.f32 %v66, %v67
    %v70 = vrsqrt.pop %v68
    %v71 = vmul.f32 %v68, %v70
    %vm72 = vcmp.eq.f32.partialorder %v68, inf
    %v73 = vsel %vm72, %v68, %v71
    %vm74 = vcmp.eq.f32.partialorder %v68, 0.0
    %v75 = vand.u32 %v68, 2147483648
    %v76 = vsel %vm74, %v75, %v73
    %v77 = vrsqrt.pop %v69
    %v78 = vmul.f32 %v69, %v77
    %vm79 = vcmp.eq.f32.partialorder %v69, inf
    %v80 = vsel %vm79, %v69, %v78
    %vm81 = vcmp.eq.f32.partialorder %v69, 0.0
    %v82 = vand.u32 %v69, 2147483648
    %v83 = vsel %vm81, %v82, %v80
    %v84 = vadd.f32 %v76, 1e-06
    %v85 = vadd.f32 %v83, 1e-06
    %v86 = vrcp.pop %v84
    %v87 = vrcp.pop %v85
    %v88 = vld [vmem:[%s1] sm:$0x1]
    %v90 = vlaneseq
    %v91 = vshrl.u32 %v90, 7
    %v92 = vsub.s32 0, %v91
    %v93 = vrot.slane %v88, %v92
    %v95 = vmul.f32 %v93, %v86
    %v96 = vmul.f32 %v93, %v87
    %v97 = vmul.f32 %v59, %v95
    %v98 = vmul.f32 %v60, %v96
    %v99 = vld [vmem:[%s2] sm:$0x1]
    %v101 = vlaneseq
    %v102 = vshrl.u32 %v101, 7
    %v103 = vsub.s32 0, %v102
    %v104 = vrot.slane %v99, %v103
    %v106 = vadd.f32 %v97, %v104
    %v107 = vadd.f32 %v98, %v104
    %v108 = vpack.c.bf16 %v107, %v106
    %v109 = vld [vmem:[#allocation5] sm:$0xf]
    %v110 = vld [vmem:[#allocation5 + $0x4] sm:$0xf]
    %v111 = vld [vmem:[#allocation5 + $0x8] sm:$0xf]
    %v112 = vld [vmem:[#allocation5 + $0xc] sm:$0xf]
    %v113 = vld [vmem:[#allocation5 + $0x10] sm:$0xf]
    %v114 = vld [vmem:[#allocation5 + $0x14] sm:$0xf]
    %v115 = vld [vmem:[#allocation5 + $0x18] sm:$0xf]
    %v116 = vld [vmem:[#allocation5 + $0x1c] sm:$0xf]
    %v117 = vld [vmem:[#allocation5 + $0x20] sm:$0xf]
    %v118 = vld [vmem:[#allocation5 + $0x24] sm:$0xf]
    %v119 = vld [vmem:[#allocation5 + $0x28] sm:$0xf]
    %v120 = vld [vmem:[#allocation5 + $0x2c] sm:$0xf]
    %v121 = vld [vmem:[#allocation5 + $0x30] sm:$0xf]
    %v122 = vld [vmem:[#allocation5 + $0x34] sm:$0xf]
    %v123 = vld [vmem:[#allocation5 + $0x38] sm:$0xf]
    %v124 = vld [vmem:[#allocation5 + $0x3c] sm:$0xf]
    %v125 = vld [vmem:[%s4] sm:$0x1]
    %v127 = vlaneseq
    %v128 = vshrl.u32 %v127, 7
    %v129 = vsub.s32 0, %v128
    %v130 = vrot.slane %v125, %v129
    %v148 = vunpack.c.l.b16 %v109
    %v149 = vunpack.c.l.b16 %v110
    %v150 = vunpack.c.l.b16 %v111
    %v151 = vunpack.c.l.b16 %v112
    %v152 = vunpack.c.l.b16 %v113
    %v153 = vunpack.c.l.b16 %v114
    %v154 = vunpack.c.l.b16 %v115
    %v155 = vunpack.c.l.b16 %v116
    %v156 = vunpack.c.l.b16 %v117
    %v157 = vunpack.c.l.b16 %v118
    %v158 = vunpack.c.l.b16 %v119
    %v159 = vunpack.c.l.b16 %v120
    %v160 = vunpack.c.l.b16 %v121
    %v161 = vunpack.c.l.b16 %v122
    %v162 = vunpack.c.l.b16 %v123
    %v163 = vunpack.c.l.b16 %v124
    %v164 = vpack.c.b16 %v149, %v148
    %v165 = vpack.c.b16 %v151, %v150
    %v166 = vpack.c.b16 %v153, %v152
    %v167 = vpack.c.b16 %v155, %v154
    %v168 = vpack.c.b16 %v157, %v156
    %v169 = vpack.c.b16 %v159, %v158
    %v170 = vpack.c.b16 %v161, %v160
    %v171 = vpack.c.b16 %v163, %v162
    %180 = vmatprep.subr.bf16.mxu0 0
    %181 = vmatpush1.bf16.msra.mxu0 %v164
    %182 = vmatprep.subr.bf16.mxu0 0
    %183 = vmatpush1.bf16.msra.mxu0 %v165
    %184 = vmatprep.subr.bf16.mxu0 0
    %185 = vmatpush1.bf16.msra.mxu0 %v166
    %186 = vmatprep.subr.bf16.mxu0 0
    %187 = vmatpush1.bf16.msra.mxu0 %v167
    %188 = vmatprep.subr.bf16.mxu0 0
    %189 = vmatpush1.bf16.msra.mxu0 %v168
    %190 = vmatprep.subr.bf16.mxu0 0
    %191 = vmatpush1.bf16.msra.mxu0 %v169
    %192 = vmatprep.subr.bf16.mxu0 0
    %193 = vmatpush1.bf16.msra.mxu0 %v170
    %194 = vmatprep.subr.bf16.mxu0 0
    %195 = vmatpush1.bf16.msra.mxu0 %v171
    %196 = vmatprep.subr.bf16.mxu0 0
    %197 = vmatpush1.bf16.msra.mxu0 0
    %198 = vmatprep.subr.bf16.mxu0 0
    %199 = vmatpush1.bf16.msra.mxu0 0
    %200 = vmatprep.subr.bf16.mxu0 0
    %201 = vmatpush1.bf16.msra.mxu0 0
    %202 = vmatprep.subr.bf16.mxu0 0
    %203 = vmatpush1.bf16.msra.mxu0 0
    %204 = vmatprep.subr.bf16.mxu0 0
    %205 = vmatpush1.bf16.msra.mxu0 0
    %206 = vmatprep.subr.bf16.mxu0 0
    %207 = vmatpush1.bf16.msra.mxu0 0
    %208 = vmatprep.subr.bf16.mxu0 0
    %209 = vmatpush1.bf16.msra.mxu0 0
    %210 = vmatprep.subr.bf16.mxu0 0
    %211 = vmatpush1.bf16.msra.mxu0 0
    %212 = vmatprep.mubr.bf16.mxu0 0
    %213 = vmatmul.mubr.bf16.gmra.mrb[0].mxu0 %v108
    %v214 = vpop.f32.mrb[0].mxu0
    %v215 = vadd.f32 %v130, %v214
    %v216 = vpop.f32.mrb[0].mxu0
    %v217 = vpop.f32.mrb[0].mxu0
    %v218 = vadd.f32 %v130, %v217
    %v219 = vpop.f32.mrb[0].mxu0
    %220 = vdwg.mxu0
    %v221 = vadd.f32 %v50, %v215
    %v222 = vadd.f32 %v51, %v218
    %223 = vst [vmem:[#allocation7] sm:$0xff] %v221
    %224 = vst [vmem:[#allocation7 + $0x8] sm:$0xff] %v222
    // Predicated region
    $region30: #{tpu_custom_call.1} parent=1 // pred_check
      _
    $region31: #{tpu_custom_call.1} parent=1 // pred_check_branch
      %226 = sbr.rel (0) target = $region33
    $region32: #{tpu_custom_call.1} parent=1 // pred_region
      %s228 = ssub.s32 256, 256
      %229 = vsyncadd [#allocation4], %s228
      %s230 = sshll.u32 [#allocation7], 4
      %s231 = int_to_ptr.vmem [resolvable:$true] %s230
      %236 = dma.vmem_to_hbm [thread:$0]  %s231, 256, %s5, [#allocation4], 128, 128, 8
    $region33: #{tpu_custom_call.1} parent=1 // pred_fallthru
      _
    // Predicated region
    $region34: #{tpu_custom_call.1} parent=1 // pred_check
      _
    $region35: #{tpu_custom_call.1} parent=1 // pred_check_branch
      %238 = sbr.rel (0) target = $region37
    $region36: #{tpu_custom_call.1} parent=1 // pred_region
      %239 = dma.done [#allocation4], 256
    $region37: #{tpu_custom_call.1} parent=1 // pred_fallthru
      _
    %240 = vsyncpa [#allocation3], 1
    %241 = vsyncpa [#allocation6], 1
    %242 = vsyncpa [#allocation4], 1

</llo_original>
